<compile_context>
chip_gen: v7x
topology: tpu7x:2x2x1
jax: 0.10.0
libtpu: 0.0.40
codegen_flags: <defaults>
</compile_context>

<pallas_src>
import functools

import jax
import jax.numpy as jnp
from jax.experimental import pallas as pl
from jax.experimental.pallas import tpu as pltpu

N_BITS = 8

_LANE_CANDIDATES = (1024, 512, 256, 128)   # lane-dense widths (multiples of 128)
_MAX_TILE_ELEMS = 2048 * 1024              # 8 MiB per f32 tile -> 32 MiB w/ dbl-buffer
_VMEM_LIMIT_BYTES = 48 << 20               # > scoped defaults, < v7x 64 MiB physical
_MIN_GRID_STEPS = 4                        # keep >= 2 steps so both v7x TCs get work
_SUBLANE = {4: 8, 2: 16, 1: 32}            # native sublane multiple per itemsize


def _round_up(x, m):
    return ((x + m - 1) // m) * m


def _dtrelu_kernel(lb_ref, ub_ref, x_ref, o_ref, *, n_bits):
    # lb_ref / ub_ref live in SMEM: shape (1,) learned bounds.  All scalar
    # math happens once per grid step, in f32, on the scalar path.
    lb = lb_ref[0].astype(jnp.float32)
    ub = ub_ref[0].astype(jnp.float32)
    levels = jnp.float32(2.0 ** (n_bits - 1) - 1.0)
    rng = ub - lb
    scale = rng / levels
    # NOTE: ub == lb -> scale == 0 / inv_scale == inf (same hazard as PyTorch).
    inv_scale = levels / rng
    # clamp(relu(x), lb, ub) == clip(x, max(lb, 0), ub), folding the relu.
    lb_eff = jnp.maximum(lb, jnp.float32(0.0))

    x = x_ref[...]
    pos = x > 0                                   # compare in the input dtype
    xf = x.astype(jnp.float32)                    # no-op for f32 inputs
    q = jnp.clip(xf, lb_eff, ub)
    q = jnp.round((q - lb) * inv_scale) * scale + lb   # fake-quantize (mul, not div)
    o_ref[...] = jnp.where(pos, q, jnp.float32(0.0)).astype(o_ref.dtype)


def dtrelu(x, lb, ub, n_bits=N_BITS, donate_input=False):
    """Elementwise DTReLU; x may have any shape (e.g. NCHW)."""
    orig_shape = x.shape
    total = x.size
    itemsize = jnp.dtype(x.dtype).itemsize
    sub = _SUBLANE.get(itemsize, 8)

    # Zero-copy lane-dense layout: pick the largest 128-multiple dividing the
    # flat size.  Common NN activation sizes always hit this path.
    lane = None
    for cand in _LANE_CANDIDATES:
        if total % cand == 0:
            lane = cand
            break

    xf = x.reshape(-1)
    padded_total = total
    if lane is None:
        # Rare ragged fallback (size not a multiple of 128): minimal pad/slice.
        lane = 128
        padded_total = _round_up(total, lane)
        xf = jnp.pad(xf, (0, padded_total - total))

    rows = padded_total // lane
    if rows < sub:
        tm = rows                                  # block == full dim (allowed)
    else:
        tm = _round_up(pl.cdiv(rows, _MIN_GRID_STEPS), sub)
        tm = min(tm, max(sub, _MAX_TILE_ELEMS // lane))
    grid = (pl.cdiv(rows, tm),)                    # ragged last block is masked

    x2 = xf.reshape(rows, lane)
    kernel = functools.partial(_dtrelu_kernel, n_bits=n_bits)

    out2 = pl.pallas_call(
        kernel,
        out_shape=jax.ShapeDtypeStruct((rows, lane), x.dtype),
        grid=grid,
        in_specs=[
            pl.BlockSpec(memory_space=pltpu.MemorySpace.SMEM),   # lb scalar
            pl.BlockSpec(memory_space=pltpu.MemorySpace.SMEM),   # ub scalar
            pl.BlockSpec((tm, lane), lambda i: (i, 0)),          # x tile
        ],
        out_specs=pl.BlockSpec((tm, lane), lambda i: (i, 0)),
        compiler_params=pltpu.CompilerParams(
            dimension_semantics=("parallel",),
            vmem_limit_bytes=_VMEM_LIMIT_BYTES),
        cost_estimate=pl.CostEstimate(
            flops=10 * padded_total,
            transcendentals=0,
            bytes_accessed=2 * padded_total * itemsize),
        input_output_aliases=({2: 0} if donate_input else {}),
    )(lb, ub, x2)

    if padded_total != total:
        return out2.reshape(-1)[:total].reshape(orig_shape)
    return out2.reshape(orig_shape)


def dtrelu_ref(x, lb, ub, n_bits=N_BITS):
    """Pure-JAX reference mirroring the PyTorch forward."""
    lb_s = lb[0]
    ub_s = ub[0]
    r = jnp.maximum(x, 0.0)
    scale = (ub_s - lb_s) / (2.0 ** (n_bits - 1) - 1.0)
    q = jnp.clip(r, lb_s, ub_s)
    q = jnp.round((q - lb_s) / scale) * scale + lb_s
    return q * (x > 0).astype(x.dtype)


if __name__ == "__main__":
    key = jax.random.PRNGKey(0)
    k0, k1 = jax.random.split(key)

    # NCHW input, small shapes (batch=2, channels=4, spatial=16).
    x = jax.random.normal(k0, (2, 4, 16, 16), dtype=jnp.float32)

    # Deterministic params matching nn.Parameter(torch.zeros(1) / ones(1)).
    lb = jnp.zeros((1,), dtype=jnp.float32)
    ub = jnp.ones((1,), dtype=jnp.float32)

    out = jax.block_until_ready(dtrelu(x, lb, ub))
    ref = dtrelu_ref(x, lb, ub)
    assert out.shape == x.shape and out.dtype == x.dtype
    # atol=1e-2 tolerates at most a single quantization level (1/127 ~ 0.0079)
    # from reciprocal-multiply vs. divide at exact round boundaries, while
    # still catching any real semantic error.
    assert jnp.allclose(out, ref, atol=1e-2, rtol=0.0), "mismatch vs reference"

    # Ragged row-count path: 3*5*16*16 = 3840 -> lane=256, rows=15, tm=8,
    # grid=(2,), exercising the masked partial last block (no padding used).
    x_r = jax.random.normal(k1, (3, 5, 16, 16), dtype=jnp.float32)
    out_r = jax.block_until_ready(dtrelu(x_r, lb, ub))
    assert jnp.allclose(out_r, dtrelu_ref(x_r, lb, ub), atol=1e-2, rtol=0.0), \
        "mismatch vs reference (ragged path)"

    print("KERNEL_OK")
</pallas_src>

<mosaic_0001>
module attributes {stable_mosaic.version = 11 : i64} {
  func.func @_dtrelu_kernel(%arg0: i32, %arg1: memref<1xf32, #tpu.memory_space<smem>>, %arg2: memref<1xf32, #tpu.memory_space<smem>>, %arg3: memref<2x1024xf32, #tpu.memory_space<vmem>>, %arg4: memref<2x1024xf32, #tpu.memory_space<vmem>>) attributes {dimension_semantics = [#tpu.dimension_semantics<parallel>], iteration_bounds = array<i64: 1>, scalar_prefetch = 0 : i64, scratch_operands = 0 : i64, tpu.core_type = #tpu.core_type<tc>, window_params = [{transform_indices = @transform_0, window_bounds = array<i64: 1>}, {transform_indices = @transform_1, window_bounds = array<i64: 1>}, {transform_indices = @transform_2, window_bounds = array<i64: 2, 1024>}, {transform_indices = @transform_3, window_bounds = array<i64: 2, 1024>}]} {
    %c0 = arith.constant 0 : index
    %0 = memref.load %arg1[%c0] : memref<1xf32, #tpu.memory_space<smem>>
    %c0_0 = arith.constant 0 : index
    %1 = memref.load %arg2[%c0_0] : memref<1xf32, #tpu.memory_space<smem>>
    %2 = arith.subf %1, %0 : f32
    %cst = arith.constant 1.270000e+02 : f32
    %3 = arith.divf %2, %cst : f32
    %cst_1 = arith.constant 1.270000e+02 : f32
    %4 = arith.divf %cst_1, %2 : f32
    %cst_2 = arith.constant 0.000000e+00 : f32
    %5 = arith.maximumf %0, %cst_2 : f32
    %c0_3 = arith.constant 0 : index
    %c0_4 = arith.constant 0 : index
    %6 = vector.load %arg3[%c0_3, %c0_4] : memref<2x1024xf32, #tpu.memory_space<vmem>>, vector<2x1024xf32>
    %cst_5 = arith.constant 0.000000e+00 : f32
    %7 = vector.broadcast %cst_5 : f32 to vector<2x1024xf32>
    %8 = arith.cmpf ogt, %6, %7 : vector<2x1024xf32>
    %9 = vector.broadcast %5 : f32 to vector<2x1024xf32>
    %10 = arith.maximumf %9, %6 : vector<2x1024xf32>
    %11 = vector.broadcast %1 : f32 to vector<2x1024xf32>
    %12 = arith.minimumf %11, %10 : vector<2x1024xf32>
    %13 = vector.broadcast %0 : f32 to vector<2x1024xf32>
    %14 = arith.subf %12, %13 : vector<2x1024xf32>
    %15 = vector.broadcast %4 : f32 to vector<2x1024xf32>
    %16 = arith.mulf %14, %15 : vector<2x1024xf32>
    %17 = math.roundeven %16 : vector<2x1024xf32>
    %18 = vector.broadcast %3 : f32 to vector<2x1024xf32>
    %19 = arith.mulf %17, %18 : vector<2x1024xf32>
    %20 = vector.broadcast %0 : f32 to vector<2x1024xf32>
    %21 = arith.addf %19, %20 : vector<2x1024xf32>
    %cst_6 = arith.constant 0.000000e+00 : f32
    %22 = vector.broadcast %cst_6 : f32 to vector<2x1024xf32>
    %23 = arith.select %8, %21, %22 : vector<2x1024xi1>, vector<2x1024xf32>
    %c0_7 = arith.constant 0 : index
    %c0_8 = arith.constant 0 : index
    %24 = vector.load %arg4[%c0_7, %c0_8] : memref<2x1024xf32, #tpu.memory_space<vmem>>, vector<2x1024xf32>
    tpu.vector_store %arg4[%c0_7, %c0_8], %23 {strides = array<i32>} : memref<2x1024xf32, #tpu.memory_space<vmem>>, vector<2x1024xf32>,
    return
  }
  func.func @transform_0(%arg0: i32) -> i32 {
    %c0_i32 = arith.constant 0 : i32
    %c0_i32_0 = arith.constant 0 : i32
    return %c0_i32 : i32
  }
  func.func @transform_1(%arg0: i32) -> i32 {
    %c0_i32 = arith.constant 0 : i32
    %c0_i32_0 = arith.constant 0 : i32
    return %c0_i32 : i32
  }
  func.func @transform_2(%arg0: i32) -> (i32, i32) {
    %c0_i32 = arith.constant 0 : i32
    %c0_i32_0 = arith.constant 0 : i32
    return %arg0, %c0_i32 : i32, i32
  }
  func.func @transform_3(%arg0: i32) -> (i32, i32) {
    %c0_i32 = arith.constant 0 : i32
    %c0_i32_0 = arith.constant 0 : i32
    return %arg0, %c0_i32 : i32, i32
  }
}

</mosaic_0001>

<llo_original>
// kernel: tpu_custom_call.1
$region0: #{tpu_custom_call.1}
  #allocation0 [shape = 'u32[]', space=smem, size = 0x4, offset = 0x4, fixed_abs, tag = 'smem constant byte address 0x4 - core index']
  #allocation1 [shape = 'u32[144,128]{1,0:T(1,128)}', space=vmem, size = 0x12000, scoped, tag = 'internal scratch']
  #allocation2 [shape = 'f32[1]{0:T(128)S(6)}', space=smem, size = 0x200, scoped, tag = 'scoped memory for tpu_custom_call.1']
  #allocation3 [shape = 'f32[1]{0:T(128)S(6)}', space=smem, size = 0x200, scoped, tag = 'scoped memory for tpu_custom_call.1']
  %s0 = inlined_call_operand.<no memory space> [shape: f32[1], index: 0, kind: input, shape index: {}]
  %s1 = inlined_call_operand.<no memory space> [shape: f32[1], index: 1, kind: input, shape index: {}]
  %s2 = inlined_call_operand.hbm [shape: f32[2,1024], index: 2, kind: input, shape index: {}]
  %s3 = inlined_call_operand.hbm [shape: f32[2,1024], index: 3, kind: output, shape index: {}]
  %s4 = sld [smem:[#allocation0]]
  $region26: #{tpu_custom_call.1} parent=0
    _
  %s6 = ssub.s32 1, %s4
  %s7 = scalar_select 0, %s6, %s4
  %8 = sst [smem:[#allocation2]] %s0
  %9 = sst [smem:[#allocation3]] %s1
  $region1: #{tpu_custom_call.1} parent=0
    #allocation4 [shape = 'u8[8192]{0}', space=vmem, size = 0x2000, scoped, tag = 'input window, operand 2, single buffered']
    #allocation5 [shape = 's32[1]{0}', space=sflag, size = 0x4, scoped, tag = 'scoped memory for tpu_custom_call.1']
    #allocation6 [shape = 's32[1]{0}', space=sflag, size = 0x4, scoped, tag = 'scoped memory for tpu_custom_call.1']
    #allocation7 [shape = 'u8[8192]{0}', space=vmem, size = 0x2000, scoped, tag = 'output window, operand 0, single buffered']
    %10 = vsyncpa [#allocation5], 0
    %11 = vsyncpa [#allocation6], 0
    // Predicated region
    $region2: #{tpu_custom_call.1} parent=1 // pred_check
      _
    $region3: #{tpu_custom_call.1} parent=1 // pred_check_branch
      %13 = sbr.rel (0) target = $region5
    $region4: #{tpu_custom_call.1} parent=1 // pred_region
      _
    $region5: #{tpu_custom_call.1} parent=1 // pred_fallthru
      _
    // Predicated region
    $region6: #{tpu_custom_call.1} parent=1 // pred_check
      _
    $region7: #{tpu_custom_call.1} parent=1 // pred_check_branch
      %15 = sbr.rel (0) target = $region9
    $region8: #{tpu_custom_call.1} parent=1 // pred_region
      _
    $region9: #{tpu_custom_call.1} parent=1 // pred_fallthru
      _
    // Predicated region
    $region10: #{tpu_custom_call.1} parent=1 // pred_check
      _
    $region11: #{tpu_custom_call.1} parent=1 // pred_check_branch
      %17 = sbr.rel (0) target = $region13
    $region12: #{tpu_custom_call.1} parent=1 // pred_region
      %s19 = ssub.s32 256, 256
      %20 = vsyncadd [#allocation5], %s19
      %s22 = sshll.u32 [#allocation4], 4
      %s23 = int_to_ptr.vmem [resolvable:$true] %s22
      %25 = dma.hbm_to_vmem [thread:$0]  %s2, 256, %s23, [#allocation5]
    $region13: #{tpu_custom_call.1} parent=1 // pred_fallthru
      _
    // Predicated region
    $region14: #{tpu_custom_call.1} parent=1 // pred_check
      _
    $region15: #{tpu_custom_call.1} parent=1 // pred_check_branch
      %27 = sbr.rel (0) target = $region17
    $region16: #{tpu_custom_call.1} parent=1 // pred_region
      %28 = dma.done [#allocation5], 256
    $region17: #{tpu_custom_call.1} parent=1 // pred_fallthru
      _
    %s29 = sld [smem:[#allocation2]]
    %s30 = sld [smem:[#allocation3]]
    %s31 = ssub.f32 %s30, %s29
    %v32 = vrcp.pop 127.0
    %s33 = vtos %v32
    %s34 = smul.f32 %s31, %s33
    %v35 = vstv %s31
    %v36 = vrcp.pop %v35
    %s37 = vtos %v36
    %s38 = smul.f32 127.0, %s37
    %s39 = smax.f32 %s29, 0.0
    %v40 = vld [vmem:[#allocation4] sm:$0xff]
    %v41 = vld [vmem:[#allocation4 + $0x8] sm:$0xff]
    %vm42 = vcmp.gt.f32.partialorder %v40, 0.0
    %vm43 = vcmp.gt.f32.partialorder %v41, 0.0
    %v44 = vstv %s39
    %v45 = vmax.f32 %v44, %v40
    %v46 = vmax.f32 %v44, %v41
    %v47 = vstv %s30
    %v48 = vmin.f32 %v47, %v45
    %v49 = vmin.f32 %v47, %v46
    %v50 = vstv %s29
    %v51 = vsub.f32 %v48, %v50
    %v52 = vsub.f32 %v49, %v50
    %v53 = vstv %s38
    %v54 = vmul.f32 %v51, %v53
    %v55 = vmul.f32 %v52, %v53
    %v56 = vround.ne.pseudo %v54
    %v57 = vround.ne.pseudo %v55
    %v58 = vstv %s34
    %v59 = vmul.f32 %v56, %v58
    %v60 = vmul.f32 %v57, %v58
    %v61 = vadd.f32 %v59, %v50
    %v62 = vadd.f32 %v60, %v50
    %v63 = vsel %vm42, %v61, 0.0
    %v64 = vsel %vm43, %v62, 0.0
    %65 = vst [vmem:[#allocation7] sm:$0xff] %v63
    %66 = vst [vmem:[#allocation7 + $0x8] sm:$0xff] %v64
    // Predicated region
    $region18: #{tpu_custom_call.1} parent=1 // pred_check
      _
    $region19: #{tpu_custom_call.1} parent=1 // pred_check_branch
      %68 = sbr.rel (0) target = $region21
    $region20: #{tpu_custom_call.1} parent=1 // pred_region
      %s70 = ssub.s32 256, 256
      %71 = vsyncadd [#allocation6], %s70
      %s73 = sshll.u32 [#allocation7], 4
      %s74 = int_to_ptr.vmem [resolvable:$true] %s73
      %76 = dma.vmem_to_hbm [thread:$0]  %s74, 256, %s3, [#allocation6]
    $region21: #{tpu_custom_call.1} parent=1 // pred_fallthru
      _
    // Predicated region
    $region22: #{tpu_custom_call.1} parent=1 // pred_check
      _
    $region23: #{tpu_custom_call.1} parent=1 // pred_check_branch
      %78 = sbr.rel (0) target = $region25
    $region24: #{tpu_custom_call.1} parent=1 // pred_region
      %79 = dma.done [#allocation6], 256
    $region25: #{tpu_custom_call.1} parent=1 // pred_fallthru
      _
    %80 = vsyncpa [#allocation5], 1
    %81 = vsyncpa [#allocation6], 1

</llo_original>
